<compile_context>
chip_gen: v7x
topology: tpu7x:2x2x1
jax: 0.10.0
libtpu: 0.0.40
codegen_flags: <defaults>
</compile_context>

<pallas_src>
import functools

import jax
import jax.numpy as jnp
from jax.experimental import pallas as pl
from jax.experimental.pallas import tpu as pltpu


# ----------------------------------------------------------------------------
# Generation-aware tiling / VMEM budget.
# ----------------------------------------------------------------------------
def _tpu_config():
    vmem_cap = 64 * 1024 * 1024
    try:
        vmem_cap = int(pltpu.get_tpu_info().vmem_capacity_bytes)
    except Exception:
        pass
    if vmem_cap >= 128 * 1024 * 1024:
        # v5e / v6e: 128 MiB VMEM -> bigger blocks, fewer DMA descriptors
        return {"tile_m": 1024, "tile_n": 1024, "vmem_limit": 96 * 1024 * 1024}
    # v7x: 64 MiB VMEM per TensorCore -> smaller tiles, smaller scoped budget
    return {"tile_m": 512, "tile_n": 512, "vmem_limit": 40 * 1024 * 1024}


# ----------------------------------------------------------------------------
# Fused matmul + bias:  out = x @ w + b, 2-D (M x N) tiled, both axes parallel.
# Used for the input projection (N = 4H) and the output projection (N = V).
# ----------------------------------------------------------------------------
def matmul_bias_kernel(x_ref, w_ref, b_ref, o_ref):
    acc = jnp.dot(x_ref[...], w_ref[...], preferred_element_type=jnp.float32)
    o_ref[...] = (acc + b_ref[...]).astype(o_ref.dtype)


def matmul_bias(x, w, b, *, out_dtype, cfg):
    """x: (M, K), w: (K, N), b: (1, N) -> (M, N). M is a multiple of 8."""
    M, K = x.shape
    _, N = w.shape
    tm = min(cfg["tile_m"], M)
    tn = min(cfg["tile_n"], N)
    grid = (pl.cdiv(M, tm), pl.cdiv(N, tn))
    return pl.pallas_call(
        matmul_bias_kernel,
        out_shape=jax.ShapeDtypeStruct((M, N), out_dtype),
        grid=grid,
        in_specs=[
            pl.BlockSpec((tm, K), lambda i, j: (i, 0)),   # activation tile (constant over j)
            pl.BlockSpec((K, tn), lambda i, j: (0, j)),   # weight tile streamed over N
            pl.BlockSpec((1, tn), lambda i, j: (0, j)),   # bias tile
        ],
        out_specs=pl.BlockSpec((tm, tn), lambda i, j: (i, j)),
        compiler_params=pltpu.CompilerParams(
            dimension_semantics=("parallel", "parallel"),
            vmem_limit_bytes=cfg["vmem_limit"],
        ),
    )(x, w, b)


# ----------------------------------------------------------------------------
# LSTM recurrence: grid over T-chunks; h/c persist in f32 VMEM scratch across
# grid steps; gates_x already holds x_t @ W_ih^T + (b_ih + b_hh).
# ----------------------------------------------------------------------------
def lstm_recurrence_kernel(gx_ref, whh_ref, hs_ref, h_sc, c_sc, *,
                           chunk, hidden_size, compute_dtype):
    H = hidden_size

    @pl.when(pl.program_id(0) == 0)
    def _():
        h_sc[...] = jnp.zeros_like(h_sc)
        c_sc[...] = jnp.zeros_like(c_sc)

    def step(t, carry):
        # gate pre-activations kept in f32: upcast the bf16 gx chunk, f32 MXU accumulation
        gates = gx_ref[t].astype(jnp.float32) + jnp.dot(
            h_sc[...].astype(compute_dtype), whh_ref[...],
            preferred_element_type=jnp.float32)

        # PyTorch gate order [i, f, g, o]
        i_g = jax.nn.sigmoid(gates[:, 0 * H:1 * H])
        f_g = jax.nn.sigmoid(gates[:, 1 * H:2 * H])
        g_g = jnp.tanh(gates[:, 2 * H:3 * H])
        o_g = jax.nn.sigmoid(gates[:, 3 * H:4 * H])

        c = f_g * c_sc[...] + i_g * g_g
        h = o_g * jnp.tanh(c)
        c_sc[...] = c
        h_sc[...] = h
        hs_ref[t] = h.astype(hs_ref.dtype)
        return carry

    # bounded unroll: enough LLO visibility without exploding i-mem / vreg pressure
    jax.lax.fori_loop(0, chunk, step, 0, unroll=4)


def lstm_recurrence(gates_x, whh_t, *, out_dtype, cfg, t_chunk=8):
    """gates_x: (T, Bp, 4H), whh_t: (H, 4H) -> hidden states (T, Bp, H)."""
    T, Bp, G4 = gates_x.shape
    H = whh_t.shape[0]
    Tc = min(t_chunk, T)
    kernel = functools.partial(
        lstm_recurrence_kernel, chunk=Tc, hidden_size=H,
        compute_dtype=whh_t.dtype)
    return pl.pallas_call(
        kernel,
        out_shape=jax.ShapeDtypeStruct((T, Bp, H), out_dtype),
        grid=(pl.cdiv(T, Tc),),
        in_specs=[
            pl.BlockSpec((Tc, Bp, G4), lambda t: (t, 0, 0)),  # gx chunk (double-buffered)
            pl.BlockSpec((H, G4), lambda t: (0, 0)),          # W_hh^T, constant block
        ],
        out_specs=pl.BlockSpec((Tc, Bp, H), lambda t: (t, 0, 0)),
        scratch_shapes=[
            pltpu.VMEM((Bp, H), jnp.float32),  # h state (persists across chunks)
            pltpu.VMEM((Bp, H), jnp.float32),  # c state
        ],
        compiler_params=pltpu.CompilerParams(
            dimension_semantics=("arbitrary",),                # sequential recurrence
            vmem_limit_bytes=cfg["vmem_limit"],
        ),
    )(gates_x, whh_t)


# ----------------------------------------------------------------------------
# Full forward pass (equivalent of DecoderRNN.forward(features, captions)).
# ----------------------------------------------------------------------------
def decoder_rnn_forward(features, captions, params, *, compute_dtype=jnp.bfloat16):
    cfg = _tpu_config()

    emb = params["embedding"]                      # (V, E)
    Wih, Whh = params["w_ih"], params["w_hh"]      # (4H, E), (4H, H)
    bih, bhh = params["b_ih"], params["b_hh"]      # (4H,), (4H,)
    Wout, bout = params["w_out"], params["b_out"]  # (V, H), (V,)

    # glue: embedding gather + prepend image feature as the first time step
    embeds_word = jnp.take(emb, captions[:, :-1], axis=0)                  # (B, L-1, E)
    embeds = jnp.concatenate([features[:, None, :], embeds_word], axis=1)  # (B, T, E)

    B, T, E = embeds.shape
    H = Whh.shape[1]
    V = Wout.shape[0]

    # pad batch to sublane width only (8 for f32, 16 for bf16)
    sub = 32 // jnp.dtype(compute_dtype).itemsize
    Bp = ((B + sub - 1) // sub) * sub

    # time-major layout for the serial recurrence (contiguous per-timestep slab)
    x_tbe = jnp.transpose(embeds, (1, 0, 2))                                # (T, B, E)
    x_tbe = jnp.pad(x_tbe, ((0, 0), (0, Bp - B), (0, 0))).astype(compute_dtype)

    wih_t = Wih.T.astype(compute_dtype)                 # (E, 4H)
    whh_t = Whh.T.astype(compute_dtype)                 # (H, 4H)
    b_gates = (bih + bhh)[None, :].astype(jnp.float32)  # (1, 4H)
    wout_t = Wout.T.astype(compute_dtype)               # (H, V)
    b_out = bout[None, :].astype(jnp.float32)           # (1, V)

    # phase 1: hoisted input projection for ALL time steps; gx stored in compute_dtype
    # (bf16 by default -> halves HBM traffic of the largest intermediate)
    gx = matmul_bias(x_tbe.reshape(T * Bp, E), wih_t, b_gates,
                     out_dtype=compute_dtype, cfg=cfg)
    gx = gx.reshape(T, Bp, 4 * H)

    # phase 2: serial LSTM recurrence, T-chunked, state carried in VMEM scratch
    hs = lstm_recurrence(gx, whh_t, out_dtype=compute_dtype, cfg=cfg)      # (T, Bp, H)

    # re-order the *small* hidden-state tensor batch-major so phase 3 emits logits
    # directly in (B, T, V) layout -> the expensive logits transpose disappears.
    hs_bm = jnp.transpose(hs, (1, 0, 2)).reshape(Bp * T, H)

    # phase 3: output projection, M- and vocab-tiled, lane-dense stores;
    # logits emitted in compute_dtype (bf16 default) to halve writeback traffic.
    logits = matmul_bias(hs_bm, wout_t, b_out, out_dtype=compute_dtype, cfg=cfg)
    logits = logits.reshape(Bp, T, V)[:B]               # drop batch padding

    return logits                                        # (B, T, V), batch_first


# ----------------------------------------------------------------------------
# Pure-JAX reference (for verification) + param init.
# ----------------------------------------------------------------------------
def decoder_rnn_reference(features, captions, params):
    emb = params["embedding"]
    Wih, Whh = params["w_ih"], params["w_hh"]
    bih, bhh = params["b_ih"], params["b_hh"]
    Wout, bout = params["w_out"], params["b_out"]

    embeds_word = jnp.take(emb, captions[:, :-1], axis=0)
    embeds = jnp.concatenate([features[:, None, :], embeds_word], axis=1)  # (B, T, E)
    B, _, _ = embeds.shape
    H = Whh.shape[1]

    def step(carry, x_t):
        h, c = carry
        gates = x_t @ Wih.T + bih + h @ Whh.T + bhh
        i, f, g, o = jnp.split(gates, 4, axis=-1)
        i, f, o = jax.nn.sigmoid(i), jax.nn.sigmoid(f), jax.nn.sigmoid(o)
        g = jnp.tanh(g)
        c = f * c + i * g
        h = o * jnp.tanh(c)
        return (h, c), h

    h0 = jnp.zeros((B, H), jnp.float32)
    c0 = jnp.zeros((B, H), jnp.float32)
    _, hs = jax.lax.scan(step, (h0, c0), jnp.transpose(embeds, (1, 0, 2)))
    out = jnp.einsum("tbh,vh->tbv", hs, Wout) + bout
    return jnp.transpose(out, (1, 0, 2))


def init_params(key, vocab_size, embed_size, hidden_size):
    ks = jax.random.split(key, 7)
    scale = 0.1
    return {
        "embedding": scale * jax.random.normal(ks[0], (vocab_size, embed_size), jnp.float32),
        "w_ih": scale * jax.random.normal(ks[1], (4 * hidden_size, embed_size), jnp.float32),
        "w_hh": scale * jax.random.normal(ks[2], (4 * hidden_size, hidden_size), jnp.float32),
        "b_ih": scale * jax.random.normal(ks[3], (4 * hidden_size,), jnp.float32),
        "b_hh": scale * jax.random.normal(ks[4], (4 * hidden_size,), jnp.float32),
        "w_out": scale * jax.random.normal(ks[5], (vocab_size, hidden_size), jnp.float32),
        "b_out": scale * jax.random.normal(ks[6], (vocab_size,), jnp.float32),
    }


if __name__ == "__main__":
    # small, module-consistent shapes
    batch = 2
    embed_size = 32
    hidden_size = 32
    vocab_size = 128
    caption_len = 8  # LSTM sequence length T = 8 (image feature + 7 word embeddings)

    key = jax.random.PRNGKey(0)
    k_feat, k_cap, k_par = jax.random.split(key, 3)

    params = init_params(k_par, vocab_size, embed_size, hidden_size)
    features = jax.random.normal(k_feat, (batch, embed_size), jnp.float32)
    captions = jax.random.randint(k_cap, (batch, caption_len), 0, vocab_size, jnp.int32)

    ref = decoder_rnn_reference(features, captions, params)

    # f32 path: numerical verification (tolerance allows for MXU f32 pass differences)
    out_f32 = decoder_rnn_forward(features, captions, params, compute_dtype=jnp.float32)
    out_f32 = jax.block_until_ready(out_f32)
    assert out_f32.shape == (batch, caption_len, vocab_size), out_f32.shape
    assert jnp.allclose(out_f32, ref, atol=5e-3, rtol=5e-3), \
        float(jnp.max(jnp.abs(out_f32 - ref)))

    # bf16 path (default / performance): bf16 operands + intermediates, f32 accumulation
    out_bf16 = decoder_rnn_forward(features, captions, params)
    out_bf16 = jax.block_until_ready(out_bf16)
    assert out_bf16.shape == (batch, caption_len, vocab_size), out_bf16.shape
    assert jnp.allclose(out_bf16.astype(jnp.float32), ref, atol=7e-2, rtol=7e-2), \
        float(jnp.max(jnp.abs(out_bf16.astype(jnp.float32) - ref)))

    print("KERNEL_OK")
</pallas_src>

<mosaic_0001>
module attributes {stable_mosaic.version = 11 : i64} {
  func.func @matmul_bias_kernel(%arg0: i32, %arg1: i32, %arg2: memref<64x32xf32, #tpu.memory_space<vmem>>, %arg3: memref<32x128xf32, #tpu.memory_space<vmem>>, %arg4: memref<1x128xf32, #tpu.memory_space<vmem>>, %arg5: memref<64x128xf32, #tpu.memory_space<vmem>>) attributes {dimension_semantics = [#tpu.dimension_semantics<parallel>, #tpu.dimension_semantics<parallel>], iteration_bounds = array<i64: 1, 1>, scalar_prefetch = 0 : i64, scratch_operands = 0 : i64, tpu.core_type = #tpu.core_type<tc>, window_params = [{transform_indices = @transform_0, window_bounds = array<i64: 64, 32>}, {transform_indices = @transform_1, window_bounds = array<i64: 32, 128>}, {transform_indices = @transform_2, window_bounds = array<i64: 1, 128>}, {transform_indices = @transform_3, window_bounds = array<i64: 64, 128>}]} {
    %c0 = arith.constant 0 : index
    %c0_0 = arith.constant 0 : index
    %0 = vector.load %arg2[%c0, %c0_0] : memref<64x32xf32, #tpu.memory_space<vmem>>, vector<64x32xf32>
    %c0_1 = arith.constant 0 : index
    %c0_2 = arith.constant 0 : index
    %1 = vector.load %arg3[%c0_1, %c0_2] : memref<32x128xf32, #tpu.memory_space<vmem>>, vector<32x128xf32>
    %cst = arith.constant dense<0.000000e+00> : vector<64x128xf32>
    %2 = tpu.matmul %0, %1, %cst {dimension_numbers = #tpu.dot_dimension_numbers<[1], [0], [0], [1], [0, 0, 1, 1], [], []>} : vector<64x32xf32>, vector<32x128xf32>, vector<64x128xf32> -> vector<64x128xf32>
    %c0_3 = arith.constant 0 : index
    %c0_4 = arith.constant 0 : index
    %3 = vector.load %arg4[%c0_3, %c0_4] : memref<1x128xf32, #tpu.memory_space<vmem>>, vector<1x128xf32>
    %4 = vector.broadcast %3 : vector<1x128xf32> to vector<64x128xf32>
    %5 = arith.addf %2, %4 : vector<64x128xf32>
    %c0_5 = arith.constant 0 : index
    %c0_6 = arith.constant 0 : index
    %6 = vector.load %arg5[%c0_5, %c0_6] : memref<64x128xf32, #tpu.memory_space<vmem>>, vector<64x128xf32>
    tpu.vector_store %arg5[%c0_5, %c0_6], %5 {strides = array<i32>} : memref<64x128xf32, #tpu.memory_space<vmem>>, vector<64x128xf32>,
    return
  }
  func.func @transform_0(%arg0: i32, %arg1: i32) -> (i32, i32) {
    %c0_i32 = arith.constant 0 : i32
    %c0_i32_0 = arith.constant 0 : i32
    return %arg0, %c0_i32 : i32, i32
  }
  func.func @transform_1(%arg0: i32, %arg1: i32) -> (i32, i32) {
    %c0_i32 = arith.constant 0 : i32
    %c0_i32_0 = arith.constant 0 : i32
    return %c0_i32, %arg1 : i32, i32
  }
  func.func @transform_2(%arg0: i32, %arg1: i32) -> (i32, i32) {
    %c0_i32 = arith.constant 0 : i32
    %c0_i32_0 = arith.constant 0 : i32
    return %c0_i32, %arg1 : i32, i32
  }
  func.func @transform_3(%arg0: i32, %arg1: i32) -> (i32, i32) {
    %c0_i32 = arith.constant 0 : i32
    return %arg0, %arg1 : i32, i32
  }
}

</mosaic_0001>

<llo_original>
// kernel: tpu_custom_call.1
$region0: #{tpu_custom_call.1}
  #allocation0 [shape = 'u32[]', space=smem, size = 0x4, offset = 0x4, fixed_abs, tag = 'smem constant byte address 0x4 - core index']
  #allocation1 [shape = 'u32[144,128]{1,0:T(1,128)}', space=vmem, size = 0x12000, scoped, tag = 'internal scratch']
  %s0 = inlined_call_operand.vmem [shape: f32[64,32], index: 0, kind: input, shape index: {}]
  %s1 = inlined_call_operand.vmem [shape: f32[32,128], index: 1, kind: input, shape index: {}]
  %s2 = inlined_call_operand.vmem [shape: f32[1,128], index: 2, kind: input, shape index: {}]
  %s3 = inlined_call_operand.hbm [shape: f32[64,128], index: 3, kind: output, shape index: {}]
  %s4 = sld [smem:[#allocation0]]
  $region22: #{tpu_custom_call.1} parent=0
    _
  %s6 = ssub.s32 1, %s4
  %s7 = scalar_select 0, %s6, %s4
  $region1: #{tpu_custom_call.1} parent=0
    #allocation2 [shape = 'u8[32768]{0}', space=vmem, size = 0x8000, scoped, tag = 'output window, operand 0, single buffered']
    #allocation3 [shape = 's32[1]{0}', space=sflag, size = 0x4, scoped, tag = 'scoped memory for tpu_custom_call.1']
    %8 = vsyncpa [#allocation3], 0
    // Predicated region
    $region2: #{tpu_custom_call.1} parent=1 // pred_check
      _
    $region3: #{tpu_custom_call.1} parent=1 // pred_check_branch
      %10 = sbr.rel (0) target = $region5
    $region4: #{tpu_custom_call.1} parent=1 // pred_region
      _
    $region5: #{tpu_custom_call.1} parent=1 // pred_fallthru
      _
    // Predicated region
    $region6: #{tpu_custom_call.1} parent=1 // pred_check
      _
    $region7: #{tpu_custom_call.1} parent=1 // pred_check_branch
      %12 = sbr.rel (0) target = $region9
    $region8: #{tpu_custom_call.1} parent=1 // pred_region
      _
    $region9: #{tpu_custom_call.1} parent=1 // pred_fallthru
      _
    // Predicated region
    $region10: #{tpu_custom_call.1} parent=1 // pred_check
      _
    $region11: #{tpu_custom_call.1} parent=1 // pred_check_branch
      %14 = sbr.rel (0) target = $region13
    $region12: #{tpu_custom_call.1} parent=1 // pred_region
      _
    $region13: #{tpu_custom_call.1} parent=1 // pred_fallthru
      _
    %v15 = vld [vmem:[%s0] sm:$0xff]
    %v16 = vld [vmem:[%s0 + $0x8] sm:$0xff]
    %v17 = vld [vmem:[%s0 + $0x10] sm:$0xff]
    %v18 = vld [vmem:[%s0 + $0x18] sm:$0xff]
    %v19 = vld [vmem:[%s0 + $0x20] sm:$0xff]
    %v20 = vld [vmem:[%s0 + $0x28] sm:$0xff]
    %v21 = vld [vmem:[%s0 + $0x30] sm:$0xff]
    %v22 = vld [vmem:[%s0 + $0x38] sm:$0xff]
    %v23 = vld [vmem:[%s1] sm:$0xff]
    %v24 = vld [vmem:[%s1 + $0x8] sm:$0xff]
    %v25 = vld [vmem:[%s1 + $0x10] sm:$0xff]
    %v26 = vld [vmem:[%s1 + $0x18] sm:$0xff]
    %v27 = vld [vmem:[%s2] sm:$0x1]
    %v29 = vlaneseq
    %v30 = vshrl.u32 %v29, 7
    %v31 = vsub.s32 0, %v30
    %v32 = vrot.slane %v27, %v31
    %vm34 = vcmask 261120
    %v36 = vsel %vm34, %v15, 0
    %v39 = vsel %vm34, %v16, 0
    %v42 = vsel %vm34, %v17, 0
    %v45 = vsel %vm34, %v18, 0
    %v48 = vsel %vm34, %v19, 0
    %v51 = vsel %vm34, %v20, 0
    %v54 = vsel %vm34, %v21, 0
    %v57 = vsel %vm34, %v22, 0
    %59 = vmatprep.subr.mxu0 0.0
    %60 = vmatpush1.msra.mxu0 %v23
    %61 = vmatprep.subr.mxu0 0.0
    %62 = vmatpush1.msra.mxu0 %v24
    %63 = vmatprep.subr.mxu0 0.0
    %64 = vmatpush1.msra.mxu0 %v25
    %65 = vmatprep.subr.mxu0 0.0
    %66 = vmatpush1.msra.mxu0 %v26
    %67 = vmatprep.subr.mxu0 0.0
    %68 = vmatpush1.msra.mxu0 0.0
    %69 = vmatprep.subr.mxu0 0.0
    %70 = vmatpush1.msra.mxu0 0.0
    %71 = vmatprep.subr.mxu0 0.0
    %72 = vmatpush1.msra.mxu0 0.0
    %73 = vmatprep.subr.mxu0 0.0
    %74 = vmatpush1.msra.mxu0 0.0
    %75 = vmatprep.subr.mxu0 0.0
    %76 = vmatpush1.msra.mxu0 0.0
    %77 = vmatprep.subr.mxu0 0.0
    %78 = vmatpush1.msra.mxu0 0.0
    %79 = vmatprep.subr.mxu0 0.0
    %80 = vmatpush1.msra.mxu0 0.0
    %81 = vmatprep.subr.mxu0 0.0
    %82 = vmatpush1.msra.mxu0 0.0
    %83 = vmatprep.subr.mxu0 0.0
    %84 = vmatpush1.msra.mxu0 0.0
    %85 = vmatprep.subr.mxu0 0.0
    %86 = vmatpush1.msra.mxu0 0.0
    %87 = vmatprep.subr.mxu0 0.0
    %88 = vmatpush1.msra.mxu0 0.0
    %89 = vmatprep.subr.mxu0 0.0
    %90 = vmatpush1.msra.mxu0 0.0
    %91 = vmatprep.subr.mxu0 0.0
    %92 = vmatpush1.msra.mxu0 0.0
    %93 = vmatprep.subr.mxu0 0.0
    %94 = vmatpush1.msra.mxu0 0.0
    %95 = vmatprep.subr.mxu0 0.0
    %96 = vmatpush1.msra.mxu0 0.0
    %97 = vmatprep.subr.mxu0 0.0
    %98 = vmatpush1.msra.mxu0 0.0
    %99 = vmatprep.subr.mxu0 0.0
    %100 = vmatpush1.msra.mxu0 0.0
    %101 = vmatprep.subr.mxu0 0.0
    %102 = vmatpush1.msra.mxu0 0.0
    %103 = vmatprep.subr.mxu0 0.0
    %104 = vmatpush1.msra.mxu0 0.0
    %105 = vmatprep.subr.mxu0 0.0
    %106 = vmatpush1.msra.mxu0 0.0
    %107 = vmatprep.subr.mxu0 0.0
    %108 = vmatpush1.msra.mxu0 0.0
    %109 = vmatprep.subr.mxu0 0.0
    %110 = vmatpush1.msra.mxu0 0.0
    %111 = vmatprep.subr.mxu0 0.0
    %112 = vmatpush1.msra.mxu0 0.0
    %113 = vmatprep.subr.mxu0 0.0
    %114 = vmatpush1.msra.mxu0 0.0
    %115 = vmatprep.subr.mxu0 0.0
    %116 = vmatpush1.msra.mxu0 0.0
    %117 = vmatprep.subr.mxu0 0.0
    %118 = vmatpush1.msra.mxu0 0.0
    %119 = vmatprep.subr.mxu0 0.0
    %120 = vmatpush1.msra.mxu0 0.0
    %121 = vmatprep.subr.mxu0 0.0
    %122 = vmatpush1.msra.mxu0 0.0
    %123 = vmatprep.mubr.f32.mxu0 0.0
    %124 = vmatmul.mubr.f32.gmra.mrb[0].mxu0 %v36
    %v125 = vpop.f32.mrb[0].mxu0
    %v126 = vadd.f32 %v32, %v125
    %v127 = vpop.f32.mrb[0].mxu0
    %128 = vmatprep.mubr.f32.mxu0 0.0
    %129 = vmatmul.mubr.f32.gmra.mrb[0].mxu0 %v39
    %v130 = vpop.f32.mrb[0].mxu0
    %v131 = vadd.f32 %v32, %v130
    %v132 = vpop.f32.mrb[0].mxu0
    %133 = vmatprep.mubr.f32.mxu0 0.0
    %134 = vmatmul.mubr.f32.gmra.mrb[0].mxu0 %v42
    %v135 = vpop.f32.mrb[0].mxu0
    %v136 = vadd.f32 %v32, %v135
    %v137 = vpop.f32.mrb[0].mxu0
    %138 = vmatprep.mubr.f32.mxu0 0.0
    %139 = vmatmul.mubr.f32.gmra.mrb[0].mxu0 %v45
    %v140 = vpop.f32.mrb[0].mxu0
    %v141 = vadd.f32 %v32, %v140
    %v142 = vpop.f32.mrb[0].mxu0
    %143 = vmatprep.mubr.f32.mxu0 0.0
    %144 = vmatmul.mubr.f32.gmra.mrb[0].mxu0 %v48
    %v145 = vpop.f32.mrb[0].mxu0
    %v146 = vadd.f32 %v32, %v145
    %v147 = vpop.f32.mrb[0].mxu0
    %148 = vmatprep.mubr.f32.mxu0 0.0
    %149 = vmatmul.mubr.f32.gmra.mrb[0].mxu0 %v51
    %v150 = vpop.f32.mrb[0].mxu0
    %v151 = vadd.f32 %v32, %v150
    %v152 = vpop.f32.mrb[0].mxu0
    %153 = vmatprep.mubr.f32.mxu0 0.0
    %154 = vmatmul.mubr.f32.gmra.mrb[0].mxu0 %v54
    %v155 = vpop.f32.mrb[0].mxu0
    %v156 = vadd.f32 %v32, %v155
    %v157 = vpop.f32.mrb[0].mxu0
    %158 = vmatprep.mubr.f32.mxu0 0.0
    %159 = vmatmul.mubr.f32.gmra.mrb[0].mxu0 %v57
    %v160 = vpop.f32.mrb[0].mxu0
    %v161 = vadd.f32 %v32, %v160
    %v162 = vpop.f32.mrb[0].mxu0
    %163 = vdwg.mxu0
    %164 = vst [vmem:[#allocation2] sm:$0xff] %v126
    %165 = vst [vmem:[#allocation2 + $0x8] sm:$0xff] %v131
    %166 = vst [vmem:[#allocation2 + $0x10] sm:$0xff] %v136
    %167 = vst [vmem:[#allocation2 + $0x18] sm:$0xff] %v141
    %168 = vst [vmem:[#allocation2 + $0x20] sm:$0xff] %v146
    %169 = vst [vmem:[#allocation2 + $0x28] sm:$0xff] %v151
    %170 = vst [vmem:[#allocation2 + $0x30] sm:$0xff] %v156
    %171 = vst [vmem:[#allocation2 + $0x38] sm:$0xff] %v161
    // Predicated region
    $region14: #{tpu_custom_call.1} parent=1 // pred_check
      _
    $region15: #{tpu_custom_call.1} parent=1 // pred_check_branch
      %173 = sbr.rel (0) target = $region17
    $region16: #{tpu_custom_call.1} parent=1 // pred_region
      %s175 = ssub.s32 1024, 1024
      %176 = vsyncadd [#allocation3], %s175
      %s177 = sshll.u32 [#allocation2], 4
      %s178 = int_to_ptr.vmem [resolvable:$true] %s177
      %183 = dma.vmem_to_hbm [thread:$0]  %s178, 1024, %s3, [#allocation3], 128, 128, 8
    $region17: #{tpu_custom_call.1} parent=1 // pred_fallthru
      _
    // Predicated region
    $region18: #{tpu_custom_call.1} parent=1 // pred_check
      _
    $region19: #{tpu_custom_call.1} parent=1 // pred_check_branch
      %185 = sbr.rel (0) target = $region21
    $region20: #{tpu_custom_call.1} parent=1 // pred_region
      %186 = dma.done [#allocation3], 1024
    $region21: #{tpu_custom_call.1} parent=1 // pred_fallthru
      _
    %187 = vsyncpa [#allocation3], 1

</llo_original>
